<compile_context>
chip_gen: v6e
topology: v6e:2x2x1
jax: 0.10.0
libtpu: 0.0.40
codegen_flags: <defaults>
</compile_context>

<pallas_src>
import functools

import jax
import jax.numpy as jnp
from jax import lax
from jax.experimental import pallas as pl
from jax.experimental.pallas import tpu as pltpu

# ----------------------------- configuration --------------------------------
IN_CH = 9            # GT_TRANSFORM_MODE != 'rt'  -> expand_conv has 9 input ch
CHANNELS = 32        # cfg.NETWORK.ROT_MODEL.NUM_CHANNELS
NUM_LAYERS = 2       # cfg.NETWORK.ROT_MODEL.NUM_LAYERS
TRANSFORM_DIM = 3    # cfg.NETWORK.TRANSFORM_DIM
OUT_CH = TRANSFORM_DIM ** 2
BN_EPS = 1e-5
LANE = 128
TN_MAX = 16384       # max spatial (lane-axis) tile width
SUB_MAX = 512        # in-kernel lane sub-tile width
MIN_GRID_STEPS = 4   # keep >= this many grid steps (v7x megacore / pipelining)


def _round_up(n, m):
    return ((n + m - 1) // m) * m


def _choose_tile(S, B):
    """Largest lane tile (multiple of 128, <= TN_MAX) that still leaves at
    least MIN_GRID_STEPS grid steps when the problem is big enough."""
    tn = min(TN_MAX, _round_up(S, LANE))
    while B * pl.cdiv(S, tn) < MIN_GRID_STEPS and tn > LANE:
        tn = max(LANE, _round_up(tn // 2, LANE))
    return tn


def _choose_sub(tn):
    """Lane sub-tile width for the in-kernel fused chunk loop."""
    for s in (SUB_MAX, 256, LANE):
        if tn % s == 0:
            return s
    return tn


# ------------------------------- kernel -------------------------------------
def rotation_mlp_kernel(x_ref, w0_ref, b0_ref, wl_ref, bl_ref, ws_ref, bs_ref,
                        o_ref, *, num_layers, sub):
    """Per-pixel MLP; channels on sublanes, spatial positions on lanes.

    x_ref : (1, IN_CH, TN)   f32 input block (cast to bf16 in-kernel)
    w0_ref: (C, IN_CH) bf16, b0_ref: (C, 1) f32        expand conv + folded BN
    wl_ref: (L, 2, C, C) bf16, bl_ref: (L, 2, C, 1) f32 residual convs + BN
    ws_ref: (OUT_CH, C) bf16, bs_ref: (OUT_CH, 1) f32   shrink conv (with bias)
    o_ref : (1, OUT_CH, TN)  bf16 output block
    """
    tn = o_ref.shape[-1]
    n_sub = tn // sub

    # Tiny resident weights: hoist loads out of the lane sub-tile loop.
    w0, b0 = w0_ref[...], b0_ref[...]
    ws, bs = ws_ref[...], bs_ref[...]
    wl = [(wl_ref[i, 0], wl_ref[i, 1]) for i in range(num_layers)]
    bl = [(bl_ref[i, 0], bl_ref[i, 1]) for i in range(num_layers)]

    def chunk(k, carry):
        start = pl.multiple_of(k * sub, sub)

        # expand_conv + expand_bn + relu   (dropout == identity in eval)
        x = x_ref[0, :, pl.ds(start, sub)].astype(jnp.bfloat16)  # (IN_CH, sub)
        h = jnp.dot(w0, x, preferred_element_type=jnp.float32)
        h = jnp.maximum(h + b0, 0.0)                              # (C, sub) f32

        # residual blocks: bf16 MXU operands, f32 accumulation / elementwise
        for i in range(num_layers):
            res = h
            h = jnp.dot(wl[i][0], h.astype(jnp.bfloat16),
                        preferred_element_type=jnp.float32)
            h = jnp.maximum(h + bl[i][0], 0.0)
            h = jnp.dot(wl[i][1], h.astype(jnp.bfloat16),
                        preferred_element_type=jnp.float32)
            h = jnp.maximum(h + bl[i][1], 0.0)
            h = res + h

        # shrink conv (with bias)
        out = jnp.dot(ws, h.astype(jnp.bfloat16),
                      preferred_element_type=jnp.float32) + bs
        o_ref[0, :, pl.ds(start, sub)] = out.astype(o_ref.dtype)
        return carry

    lax.fori_loop(0, n_sub, chunk, 0, unroll=True)


# ------------------------------ wrapper --------------------------------------
def rotation_model_pallas(x, params):
    """x: (B, 3, 3, T, h, w) f32. Returns (B, TD, TD, T, h*w) in bfloat16."""
    B, d1, d2, T, hh, ww = x.shape
    assert d1 * d2 == IN_CH
    S = T * hh * ww

    # (B, 3, 3, T, h, w) -> (B, 9, T*h*w): pure reshape, no HBM copy, no cast.
    x_flat = x.reshape(B, IN_CH, S)

    tn = _choose_tile(S, B)
    sub = _choose_sub(tn)
    grid = (B, pl.cdiv(S, tn))          # ragged last block masked by Pallas

    kernel = functools.partial(rotation_mlp_kernel,
                               num_layers=NUM_LAYERS, sub=sub)

    per_pos_flops = 2 * (IN_CH * CHANNELS
                         + NUM_LAYERS * 2 * CHANNELS * CHANNELS
                         + CHANNELS * OUT_CH)
    cost = pl.CostEstimate(
        flops=B * S * per_pos_flops,
        transcendentals=0,
        bytes_accessed=B * S * (IN_CH * 4 + OUT_CH * 2))

    out = pl.pallas_call(
        kernel,
        out_shape=jax.ShapeDtypeStruct((B, OUT_CH, S), jnp.bfloat16),
        grid_spec=pltpu.PrefetchScalarGridSpec(
            num_scalar_prefetch=0,
            grid=grid,
            in_specs=[
                pl.BlockSpec((1, IN_CH, tn), lambda b, s: (b, 0, s)),
                # weights / biases: tiny constant-index resident blocks
                pl.BlockSpec((CHANNELS, IN_CH), lambda b, s: (0, 0)),
                pl.BlockSpec((CHANNELS, 1), lambda b, s: (0, 0)),
                pl.BlockSpec((NUM_LAYERS, 2, CHANNELS, CHANNELS),
                             lambda b, s: (0, 0, 0, 0)),
                pl.BlockSpec((NUM_LAYERS, 2, CHANNELS, 1),
                             lambda b, s: (0, 0, 0, 0)),
                pl.BlockSpec((OUT_CH, CHANNELS), lambda b, s: (0, 0)),
                pl.BlockSpec((OUT_CH, 1), lambda b, s: (0, 0)),
            ],
            out_specs=pl.BlockSpec((1, OUT_CH, tn), lambda b, s: (b, 0, s)),
        ),
        compiler_params=pltpu.CompilerParams(
            dimension_semantics=("parallel", "parallel")),
        cost_estimate=cost,
    )(x_flat, params["w0t"], params["b0"], params["wlt"], params["bl"],
      params["wst"], params["bs"])

    # (B, 9, T*h*w) -> (B, 3, 3, T, h*w): free reshape, matches module output.
    return out.reshape(B, TRANSFORM_DIM, TRANSFORM_DIM, T, hh * ww)


# --------------------------- parameter setup ---------------------------------
def fold_bn_t(w_oi, gamma, beta, mean, var):
    """Fold BatchNorm (running stats) into a bias-free 1x1 conv.

    w_oi: (C_out, C_in) weight for the W @ X formulation.
    Returns (w', bias) with bias shaped (C_out, 1).
    """
    scale = gamma / jnp.sqrt(var + BN_EPS)                 # (C_out,)
    return w_oi * scale[:, None], (beta - mean * scale)[:, None]


def init_params(key):
    ks = jax.random.split(key, 6)

    def bn_params(k, c):
        k1, k2, k3, k4 = jax.random.split(k, 4)
        gamma = 1.0 + 0.1 * jax.random.normal(k1, (c,), jnp.float32)
        beta = 0.1 * jax.random.normal(k2, (c,), jnp.float32)
        mean = 0.1 * jax.random.normal(k3, (c,), jnp.float32)
        var = 1.0 + 0.1 * jnp.abs(jax.random.normal(k4, (c,), jnp.float32))
        return gamma, beta, mean, var

    # expand_conv (9 -> C, bias-free) + expand_bn, folded.  Stored (C_out, C_in).
    w_exp = 0.1 * jax.random.normal(ks[0], (CHANNELS, IN_CH), jnp.float32)
    w0t, b0 = fold_bn_t(w_exp, *bn_params(ks[1], CHANNELS))

    # residual-block convs/bns, folded, stacked as (L, 2, C, C) / (L, 2, C, 1)
    wl, bl = [], []
    for i in range(NUM_LAYERS):
        wi, bi = [], []
        for j in range(2):
            w = 0.1 * jax.random.normal(jax.random.fold_in(ks[2], 2 * i + j),
                                        (CHANNELS, CHANNELS), jnp.float32)
            wf, bf = fold_bn_t(w, *bn_params(jax.random.fold_in(ks[3], 2 * i + j),
                                             CHANNELS))
            wi.append(wf)
            bi.append(bf)
        wl.append(jnp.stack(wi))
        bl.append(jnp.stack(bi))
    wlt = jnp.stack(wl)                                    # (L, 2, C, C)
    blf = jnp.stack(bl)                                    # (L, 2, C, 1)

    # shrink conv (C -> TD^2) with bias, stored (C_out, C_in)
    wst = 0.1 * jax.random.normal(ks[4], (OUT_CH, CHANNELS), jnp.float32)
    bs = 0.1 * jax.random.normal(ks[5], (OUT_CH, 1), jnp.float32)

    return {
        "w0t": w0t.astype(jnp.bfloat16), "b0": b0,
        "wlt": wlt.astype(jnp.bfloat16), "bl": blf,
        "wst": wst.astype(jnp.bfloat16), "bs": bs,
    }


# --------------------------- pure-JAX reference ------------------------------
def rotation_model_ref(x, params):
    """Same math as the kernel (bf16 matmul operands, f32 accumulate)."""
    B, _, _, T, hh, ww = x.shape
    S = T * hh * ww
    xr = x.reshape(B, IN_CH, S).astype(jnp.bfloat16).astype(jnp.float32)

    w0 = params["w0t"].astype(jnp.float32)
    h = jnp.einsum("oc,bcs->bos", w0, xr) + params["b0"][None]
    h = jnp.maximum(h, 0.0)
    for i in range(NUM_LAYERS):
        res = h
        for j in range(2):
            w = params["wlt"][i, j].astype(jnp.float32)
            hb = h.astype(jnp.bfloat16).astype(jnp.float32)
            h = jnp.maximum(jnp.einsum("oc,bcs->bos", w, hb)
                            + params["bl"][i, j][None], 0.0)
        h = res + h
    ws = params["wst"].astype(jnp.float32)
    hb = h.astype(jnp.bfloat16).astype(jnp.float32)
    out = jnp.einsum("oc,bcs->bos", ws, hb) + params["bs"][None]
    return out.reshape(B, TRANSFORM_DIM, TRANSFORM_DIM, T, hh * ww)


# --------------------------------- main --------------------------------------
if __name__ == "__main__":
    key = jax.random.PRNGKey(0)
    k_x, k_p = jax.random.split(key)
    params = init_params(k_p)
    fwd = jax.jit(rotation_model_pallas)

    # small shape, a ragged shape (masked edge block), and a multi-sub-tile shape
    shapes = [
        (2, 3, 3, 8, 4, 4),    # S = 128  -> one exact lane tile per batch
        (1, 3, 3, 5, 8, 17),   # S = 680  -> 6 tiles of 128, ragged last block
        (2, 3, 3, 4, 16, 24),  # S = 1536 -> tn = 768, 3 in-kernel sub-tiles
    ]
    for n, shp in enumerate(shapes):
        x = jax.random.normal(jax.random.fold_in(k_x, n), shp, jnp.float32)
        out = jax.block_until_ready(fwd(x, params))
        ref = rotation_model_ref(x, params)

        B, _, _, T, hh, ww = shp
        assert out.shape == (B, TRANSFORM_DIM, TRANSFORM_DIM, T, hh * ww), out.shape
        assert jnp.allclose(out.astype(jnp.float32), ref, atol=2e-2, rtol=2e-2), \
            f"mismatch vs reference for shape {shp}"

    print("KERNEL_OK")
</pallas_src>

<mosaic_0001>
module attributes {stable_mosaic.version = 11 : i64} {
  func.func @rotation_mlp_kernel(%arg0: i32, %arg1: i32, %arg2: memref<1x9x128xf32, #tpu.memory_space<vmem>>, %arg3: memref<32x9xbf16, #tpu.memory_space<vmem>>, %arg4: memref<32x1xf32, #tpu.memory_space<vmem>>, %arg5: memref<2x2x32x32xbf16, #tpu.memory_space<vmem>>, %arg6: memref<2x2x32x1xf32, #tpu.memory_space<vmem>>, %arg7: memref<9x32xbf16, #tpu.memory_space<vmem>>, %arg8: memref<9x1xf32, #tpu.memory_space<vmem>>, %arg9: memref<1x9x128xbf16, #tpu.memory_space<vmem>>) attributes {dimension_semantics = [#tpu.dimension_semantics<parallel>, #tpu.dimension_semantics<parallel>], iteration_bounds = array<i64: 2, 1>, scalar_prefetch = 0 : i64, scratch_operands = 0 : i64, tpu.core_type = #tpu.core_type<tc>, window_params = [{transform_indices = @transform_0, window_bounds = array<i64: 1, 9, 128>}, {pipeline_mode = #tpu.pipeline_mode<synchronous>, transform_indices = @transform_1, window_bounds = array<i64: 32, 9>}, {pipeline_mode = #tpu.pipeline_mode<synchronous>, transform_indices = @transform_2, window_bounds = array<i64: 32, 1>}, {pipeline_mode = #tpu.pipeline_mode<synchronous>, transform_indices = @transform_3, window_bounds = array<i64: 2, 2, 32, 32>}, {pipeline_mode = #tpu.pipeline_mode<synchronous>, transform_indices = @transform_4, window_bounds = array<i64: 2, 2, 32, 1>}, {pipeline_mode = #tpu.pipeline_mode<synchronous>, transform_indices = @transform_5, window_bounds = array<i64: 9, 32>}, {pipeline_mode = #tpu.pipeline_mode<synchronous>, transform_indices = @transform_6, window_bounds = array<i64: 9, 1>}, {transform_indices = @transform_7, window_bounds = array<i64: 1, 9, 128>}]} {
    %c0 = arith.constant 0 : index
    %c0_0 = arith.constant 0 : index
    %0 = vector.load %arg3[%c0, %c0_0] : memref<32x9xbf16, #tpu.memory_space<vmem>>, vector<32x9xbf16>
    %c0_1 = arith.constant 0 : index
    %c0_2 = arith.constant 0 : index
    %1 = vector.load %arg4[%c0_1, %c0_2] : memref<32x1xf32, #tpu.memory_space<vmem>>, vector<32x1xf32>
    %c0_3 = arith.constant 0 : index
    %c0_4 = arith.constant 0 : index
    %2 = vector.load %arg7[%c0_3, %c0_4] : memref<9x32xbf16, #tpu.memory_space<vmem>>, vector<9x32xbf16>
    %c0_5 = arith.constant 0 : index
    %c0_6 = arith.constant 0 : index
    %3 = vector.load %arg8[%c0_5, %c0_6] : memref<9x1xf32, #tpu.memory_space<vmem>>, vector<9x1xf32>
    %c0_7 = arith.constant 0 : index
    %c0_8 = arith.constant 0 : index
    %c0_9 = arith.constant 0 : index
    %c0_10 = arith.constant 0 : index
    %4 = vector.load %arg5[%c0_7, %c0_8, %c0_9, %c0_10] : memref<2x2x32x32xbf16, #tpu.memory_space<vmem>>, vector<1x1x32x32xbf16>
    %5 = vector.shape_cast %4 : vector<1x1x32x32xbf16> to vector<32x32xbf16>
    %c0_11 = arith.constant 0 : index
    %c1 = arith.constant 1 : index
    %c0_12 = arith.constant 0 : index
    %c0_13 = arith.constant 0 : index
    %6 = vector.load %arg5[%c0_11, %c1, %c0_12, %c0_13] : memref<2x2x32x32xbf16, #tpu.memory_space<vmem>>, vector<1x1x32x32xbf16>
    %7 = vector.shape_cast %6 : vector<1x1x32x32xbf16> to vector<32x32xbf16>
    %c1_14 = arith.constant 1 : index
    %c0_15 = arith.constant 0 : index
    %c0_16 = arith.constant 0 : index
    %c0_17 = arith.constant 0 : index
    %8 = vector.load %arg5[%c1_14, %c0_15, %c0_16, %c0_17] : memref<2x2x32x32xbf16, #tpu.memory_space<vmem>>, vector<1x1x32x32xbf16>
    %9 = vector.shape_cast %8 : vector<1x1x32x32xbf16> to vector<32x32xbf16>
    %c1_18 = arith.constant 1 : index
    %c1_19 = arith.constant 1 : index
    %c0_20 = arith.constant 0 : index
    %c0_21 = arith.constant 0 : index
    %10 = vector.load %arg5[%c1_18, %c1_19, %c0_20, %c0_21] : memref<2x2x32x32xbf16, #tpu.memory_space<vmem>>, vector<1x1x32x32xbf16>
    %11 = vector.shape_cast %10 : vector<1x1x32x32xbf16> to vector<32x32xbf16>
    %c0_22 = arith.constant 0 : index
    %c0_23 = arith.constant 0 : index
    %c0_24 = arith.constant 0 : index
    %c0_25 = arith.constant 0 : index
    %12 = vector.load %arg6[%c0_22, %c0_23, %c0_24, %c0_25] : memref<2x2x32x1xf32, #tpu.memory_space<vmem>>, vector<1x1x32x1xf32>
    %13 = vector.shape_cast %12 : vector<1x1x32x1xf32> to vector<32x1xf32>
    %c0_26 = arith.constant 0 : index
    %c1_27 = arith.constant 1 : index
    %c0_28 = arith.constant 0 : index
    %c0_29 = arith.constant 0 : index
    %14 = vector.load %arg6[%c0_26, %c1_27, %c0_28, %c0_29] : memref<2x2x32x1xf32, #tpu.memory_space<vmem>>, vector<1x1x32x1xf32>
    %15 = vector.shape_cast %14 : vector<1x1x32x1xf32> to vector<32x1xf32>
    %c1_30 = arith.constant 1 : index
    %c0_31 = arith.constant 0 : index
    %c0_32 = arith.constant 0 : index
    %c0_33 = arith.constant 0 : index
    %16 = vector.load %arg6[%c1_30, %c0_31, %c0_32, %c0_33] : memref<2x2x32x1xf32, #tpu.memory_space<vmem>>, vector<1x1x32x1xf32>
    %17 = vector.shape_cast %16 : vector<1x1x32x1xf32> to vector<32x1xf32>
    %c1_34 = arith.constant 1 : index
    %c1_35 = arith.constant 1 : index
    %c0_36 = arith.constant 0 : index
    %c0_37 = arith.constant 0 : index
    %18 = vector.load %arg6[%c1_34, %c1_35, %c0_36, %c0_37] : memref<2x2x32x1xf32, #tpu.memory_space<vmem>>, vector<1x1x32x1xf32>
    %19 = vector.shape_cast %18 : vector<1x1x32x1xf32> to vector<32x1xf32>
    %c0_i32 = arith.constant 0 : i32
    %c128_i32 = arith.constant 128 : i32
    %20 = arith.muli %c0_i32, %c128_i32 : i32
    %21 = tpu.assume_multiple %20, 128 : i32
    %c0_38 = arith.constant 0 : index
    %c0_39 = arith.constant 0 : index
    %22 = arith.index_cast %21 : i32 to index
    %23 = vector.load %arg2[%c0_38, %c0_39, %22] : memref<1x9x128xf32, #tpu.memory_space<vmem>>, vector<1x9x128xf32>
    %24 = vector.shape_cast %23 : vector<1x9x128xf32> to vector<9x128xf32>
    %25 = arith.truncf %24 : vector<9x128xf32> to vector<9x128xbf16>
    %cst = arith.constant dense<0.000000e+00> : vector<32x128xf32>
    %26 = tpu.matmul %0, %25, %cst {dimension_numbers = #tpu.dot_dimension_numbers<[1], [0], [0], [1], [0, 0, 1, 1], [], []>} : vector<32x9xbf16>, vector<9x128xbf16>, vector<32x128xf32> -> vector<32x128xf32>
    %27 = vector.broadcast %1 : vector<32x1xf32> to vector<32x128xf32>
    %28 = arith.addf %26, %27 : vector<32x128xf32>
    %cst_40 = arith.constant 0.000000e+00 : f32
    %29 = vector.broadcast %cst_40 : f32 to vector<32x128xf32>
    %30 = arith.maximumf %28, %29 : vector<32x128xf32>
    %31 = arith.truncf %30 : vector<32x128xf32> to vector<32x128xbf16>
    %cst_41 = arith.constant dense<0.000000e+00> : vector<32x128xf32>
    %32 = tpu.matmul %5, %31, %cst_41 {dimension_numbers = #tpu.dot_dimension_numbers<[1], [0], [0], [1], [0, 0, 1, 1], [], []>} : vector<32x32xbf16>, vector<32x128xbf16>, vector<32x128xf32> -> vector<32x128xf32>
    %33 = vector.broadcast %13 : vector<32x1xf32> to vector<32x128xf32>
    %34 = arith.addf %32, %33 : vector<32x128xf32>
    %cst_42 = arith.constant 0.000000e+00 : f32
    %35 = vector.broadcast %cst_42 : f32 to vector<32x128xf32>
    %36 = arith.maximumf %34, %35 : vector<32x128xf32>
    %37 = arith.truncf %36 : vector<32x128xf32> to vector<32x128xbf16>
    %cst_43 = arith.constant dense<0.000000e+00> : vector<32x128xf32>
    %38 = tpu.matmul %7, %37, %cst_43 {dimension_numbers = #tpu.dot_dimension_numbers<[1], [0], [0], [1], [0, 0, 1, 1], [], []>} : vector<32x32xbf16>, vector<32x128xbf16>, vector<32x128xf32> -> vector<32x128xf32>
    %39 = vector.broadcast %15 : vector<32x1xf32> to vector<32x128xf32>
    %40 = arith.addf %38, %39 : vector<32x128xf32>
    %cst_44 = arith.constant 0.000000e+00 : f32
    %41 = vector.broadcast %cst_44 : f32 to vector<32x128xf32>
    %42 = arith.maximumf %40, %41 : vector<32x128xf32>
    %43 = arith.addf %30, %42 : vector<32x128xf32>
    %44 = arith.truncf %43 : vector<32x128xf32> to vector<32x128xbf16>
    %cst_45 = arith.constant dense<0.000000e+00> : vector<32x128xf32>
    %45 = tpu.matmul %9, %44, %cst_45 {dimension_numbers = #tpu.dot_dimension_numbers<[1], [0], [0], [1], [0, 0, 1, 1], [], []>} : vector<32x32xbf16>, vector<32x128xbf16>, vector<32x128xf32> -> vector<32x128xf32>
    %46 = vector.broadcast %17 : vector<32x1xf32> to vector<32x128xf32>
    %47 = arith.addf %45, %46 : vector<32x128xf32>
    %cst_46 = arith.constant 0.000000e+00 : f32
    %48 = vector.broadcast %cst_46 : f32 to vector<32x128xf32>
    %49 = arith.maximumf %47, %48 : vector<32x128xf32>
    %50 = arith.truncf %49 : vector<32x128xf32> to vector<32x128xbf16>
    %cst_47 = arith.constant dense<0.000000e+00> : vector<32x128xf32>
    %51 = tpu.matmul %11, %50, %cst_47 {dimension_numbers = #tpu.dot_dimension_numbers<[1], [0], [0], [1], [0, 0, 1, 1], [], []>} : vector<32x32xbf16>, vector<32x128xbf16>, vector<32x128xf32> -> vector<32x128xf32>
    %52 = vector.broadcast %19 : vector<32x1xf32> to vector<32x128xf32>
    %53 = arith.addf %51, %52 : vector<32x128xf32>
    %cst_48 = arith.constant 0.000000e+00 : f32
    %54 = vector.broadcast %cst_48 : f32 to vector<32x128xf32>
    %55 = arith.maximumf %53, %54 : vector<32x128xf32>
    %56 = arith.addf %43, %55 : vector<32x128xf32>
    %57 = arith.truncf %56 : vector<32x128xf32> to vector<32x128xbf16>
    %cst_49 = arith.constant dense<0.000000e+00> : vector<9x128xf32>
    %58 = tpu.matmul %2, %57, %cst_49 {dimension_numbers = #tpu.dot_dimension_numbers<[1], [0], [0], [1], [0, 0, 1, 1], [], []>} : vector<9x32xbf16>, vector<32x128xbf16>, vector<9x128xf32> -> vector<9x128xf32>
    %59 = vector.broadcast %3 : vector<9x1xf32> to vector<9x128xf32>
    %60 = arith.addf %58, %59 : vector<9x128xf32>
    %61 = arith.truncf %60 : vector<9x128xf32> to vector<9x128xbf16>
    %c0_50 = arith.constant 0 : index
    %c0_51 = arith.constant 0 : index
    %62 = arith.index_cast %21 : i32 to index
    %63 = vector.load %arg9[%c0_50, %c0_51, %62] : memref<1x9x128xbf16, #tpu.memory_space<vmem>>, vector<1x9x128xbf16>
    %64 = vector.shape_cast %63 : vector<1x9x128xbf16> to vector<9x128xbf16>
    %65 = vector.shape_cast %61 : vector<9x128xbf16> to vector<1x9x128xbf16>
    tpu.vector_store %arg9[%c0_50, %c0_51, %62], %65 {strides = array<i32>} : memref<1x9x128xbf16, #tpu.memory_space<vmem>>, vector<1x9x128xbf16>,
    %c1_i32 = arith.constant 1 : i32
    return
  }
  func.func @transform_0(%arg0: i32, %arg1: i32) -> (i32, i32, i32) {
    %c0_i32 = arith.constant 0 : i32
    %c0_i32_0 = arith.constant 0 : i32
    return %arg0, %c0_i32, %arg1 : i32, i32, i32
  }
  func.func @transform_1(%arg0: i32, %arg1: i32) -> (i32, i32) {
    %c0_i32 = arith.constant 0 : i32
    %c0_i32_0 = arith.constant 0 : i32
    %c0_i32_1 = arith.constant 0 : i32
    return %c0_i32, %c0_i32_0 : i32, i32
  }
  func.func @transform_2(%arg0: i32, %arg1: i32) -> (i32, i32) {
    %c0_i32 = arith.constant 0 : i32
    %c0_i32_0 = arith.constant 0 : i32
    %c0_i32_1 = arith.constant 0 : i32
    return %c0_i32, %c0_i32_0 : i32, i32
  }
  func.func @transform_3(%arg0: i32, %arg1: i32) -> (i32, i32, i32, i32) {
    %c0_i32 = arith.constant 0 : i32
    %c0_i32_0 = arith.constant 0 : i32
    %c0_i32_1 = arith.constant 0 : i32
    %c0_i32_2 = arith.constant 0 : i32
    %c0_i32_3 = arith.constant 0 : i32
    return %c0_i32, %c0_i32_0, %c0_i32_1, %c0_i32_2 : i32, i32, i32, i32
  }
  func.func @transform_4(%arg0: i32, %arg1: i32) -> (i32, i32, i32, i32) {
    %c0_i32 = arith.constant 0 : i32
    %c0_i32_0 = arith.constant 0 : i32
    %c0_i32_1 = arith.constant 0 : i32
    %c0_i32_2 = arith.constant 0 : i32
    %c0_i32_3 = arith.constant 0 : i32
    return %c0_i32, %c0_i32_0, %c0_i32_1, %c0_i32_2 : i32, i32, i32, i32
  }
  func.func @transform_5(%arg0: i32, %arg1: i32) -> (i32, i32) {
    %c0_i32 = arith.constant 0 : i32
    %c0_i32_0 = arith.constant 0 : i32
    %c0_i32_1 = arith.constant 0 : i32
    return %c0_i32, %c0_i32_0 : i32, i32
  }
  func.func @transform_6(%arg0: i32, %arg1: i32) -> (i32, i32) {
    %c0_i32 = arith.constant 0 : i32
    %c0_i32_0 = arith.constant 0 : i32
    %c0_i32_1 = arith.constant 0 : i32
    return %c0_i32, %c0_i32_0 : i32, i32
  }
  func.func @transform_7(%arg0: i32, %arg1: i32) -> (i32, i32, i32) {
    %c0_i32 = arith.constant 0 : i32
    %c0_i32_0 = arith.constant 0 : i32
    return %arg0, %c0_i32, %arg1 : i32, i32, i32
  }
}

</mosaic_0001>

<llo_original>
// kernel: rotation_model_pallas.1
$region0: #{rotation_model_pallas.1}
  #allocation0 [shape = 'u32[]', space=smem, size = 0x4, offset = 0x4, fixed_abs, tag = 'smem constant byte address 0x4 - core index']
  #allocation1 [shape = 'u32[144,128]{1,0:T(1,128)}', space=vmem, size = 0x12000, scoped, tag = 'internal scratch']
  %s0 = inlined_call_operand.vmem [shape: f32[2,9,128], index: 0, kind: input, shape index: {}]
  %s1 = inlined_call_operand.vmem [shape: bf16[32,9], index: 1, kind: input, shape index: {}]
  %s2 = inlined_call_operand.vmem [shape: f32[32,1], index: 2, kind: input, shape index: {}]
  %s3 = inlined_call_operand.vmem [shape: bf16[2,2,32,32], index: 3, kind: input, shape index: {}]
  %s4 = inlined_call_operand.vmem [shape: f32[2,2,32,1], index: 4, kind: input, shape index: {}]
  %s5 = inlined_call_operand.vmem [shape: bf16[9,32], index: 5, kind: input, shape index: {}]
  %s6 = inlined_call_operand.vmem [shape: f32[9,1], index: 6, kind: input, shape index: {}]
  %s7 = inlined_call_operand.vmem [shape: bf16[2,9,128], index: 7, kind: output, shape index: {}]
  %s8 = sld [smem:[#allocation0]]
  $region61: #{rotation_model_pallas.1} parent=0
    _
  %s10 = ssub.s32 1, %s8
  %s11 = scalar_select 0, %s10, %s8
  loop: start=0, step=1, limit=4
  $region2: #{rotation_model_pallas.1} parent=0 // loop_pre_header
    _
  $region3: #{rotation_model_pallas.1} parent=0 // loop_header
    %s13 = sphi 0, %s17
    %p14 = scmp.ge.s32.totalorder %s13, 4
    %s20 = sphi 0, %s32
    %s21 = sphi 0, %s28
    %s22 = sphi 0, %s20
    %s23 = sphi 0, %s21
    %s24 = sphi 0, %s22
    %s25 = sphi 0, %s23
    %s37 = sphi 0, %s39
    %s40 = sphi 0, %s37
    %s41 = sphi 0, %s40
    %s57 = sphi 0, %s41
    %s61 = sphi 0, %s61
    %s63 = sphi 0, %s61
    %s64 = sphi 0, %s63
    %s78 = sphi 0, %s64
    %s82 = sphi 0, %s82
    %s84 = sphi 0, %s82
    %s85 = sphi 0, %s84
    %s99 = sphi 0, %s85
    %s103 = sphi 0, %s103
    %s105 = sphi 0, %s103
    %s106 = sphi 0, %s105
    %s120 = sphi 0, %s106
    %s124 = sphi 0, %s124
    %s126 = sphi 0, %s124
    %s127 = sphi 0, %s126
    %s141 = sphi 0, %s127
    %s145 = sphi 0, %s145
    %s147 = sphi 0, %s145
    %s148 = sphi 0, %s147
    %s162 = sphi 0, %s148
    %s166 = sphi 0, %s166
    %s168 = sphi 0, %s166
    %s169 = sphi 0, %s168
    %s183 = sphi 0, %s169
    %s191 = sphi 0, %s193
    %s194 = sphi 0, %s191
    %s195 = sphi 0, %s194
    %s211 = sphi 0, %s195
  $region4: #{rotation_model_pallas.1} parent=0 // loop_header_branch
    %16 = sbr.rel (%p14) target = $region8
  $region5: #{rotation_model_pallas.1} parent=0 // loop_body
    %s18 = ssub.s32 %s13, 1
    %s19 = ssub.s32 %s13, 2
    %s26 = sadd.s32 1, %s21
    %p27 = scmp.ge.s32.totalorder %s26, 1
    %s28 = scalar_select %p27, 0, %s26
    %s29 = sadd.s32 1, %s20
    %s30 = scalar_select %p27, %s29, %s20
    %p31 = scmp.ge.s32.totalorder %s30, 2
    %s32 = scalar_select %p31, 0, %s30
    %s33 = ssub.s32 %s20, %s32
    %s34 = ssub.s32 %s21, %s28
    %s35 = sor.u32 %s33, %s34
    %p36 = scmp.eq.s32.totalorder %s35, 0
    %s38 = sadd.s32 %s37, 1
    %s39 = scalar_select %p36, %s37, %s38
    %p42 = pneg %p36
    %p43 = scmp.eq.s32.totalorder %s13, 1
    %p44 = por %p42, %p43
    %p45 = scmp.ne.s32.totalorder %s37, %s40
    %p46 = scmp.eq.s32.totalorder %s13, 0
    %p47 = por %p45, %p46
    %p48 = scmp.ne.s32.totalorder %s37, %s40
    %p49 = scmp.eq.s32.totalorder %s18, 1
    %p50 = por %p48, %p49
    %p51 = scmp.ne.s32.totalorder %s40, %s41
    %p52 = scmp.eq.s32.totalorder %s18, 0
    %p53 = por %p51, %p52
    %p54 = scmp.ne.s32.totalorder %s40, %s41
    %p55 = scmp.eq.s32.totalorder %s19, 1
    %p56 = por %p54, %p55
    %p58 = scmp.ne.s32.totalorder %s41, %s57
    %p59 = scmp.eq.s32.totalorder %s19, 0
    %p60 = por %p58, %p59
    %s62 = sadd.s32 %s61, 1
    %p65 = scmp.eq.s32.totalorder %s13, 1
    %p66 = scmp.ne.s32.totalorder %s61, %s63
    %p67 = scmp.eq.s32.totalorder %s13, 0
    %p68 = por %p66, %p67
    %p69 = scmp.ne.s32.totalorder %s61, %s63
    %p70 = scmp.eq.s32.totalorder %s18, 1
    %p71 = por %p69, %p70
    %p72 = scmp.ne.s32.totalorder %s63, %s64
    %p73 = scmp.eq.s32.totalorder %s18, 0
    %p74 = por %p72, %p73
    %p75 = scmp.ne.s32.totalorder %s63, %s64
    %p76 = scmp.eq.s32.totalorder %s19, 1
    %p77 = por %p75, %p76
    %p79 = scmp.ne.s32.totalorder %s64, %s78
    %p80 = scmp.eq.s32.totalorder %s19, 0
    %p81 = por %p79, %p80
    %s83 = sadd.s32 %s82, 1
    %p86 = scmp.eq.s32.totalorder %s13, 1
    %p87 = scmp.ne.s32.totalorder %s82, %s84
    %p88 = scmp.eq.s32.totalorder %s13, 0
    %p89 = por %p87, %p88
    %p90 = scmp.ne.s32.totalorder %s82, %s84
    %p91 = scmp.eq.s32.totalorder %s18, 1
    %p92 = por %p90, %p91
    %p93 = scmp.ne.s32.totalorder %s84, %s85
    %p94 = scmp.eq.s32.totalorder %s18, 0
    %p95 = por %p93, %p94
    %p96 = scmp.ne.s32.totalorder %s84, %s85
    %p97 = scmp.eq.s32.totalorder %s19, 1
    %p98 = por %p96, %p97
    %p100 = scmp.ne.s32.totalorder %s85, %s99
    %p101 = scmp.eq.s32.totalorder %s19, 0
    %p102 = por %p100, %p101
    %s104 = sadd.s32 %s103, 1
    %p107 = scmp.eq.s32.totalorder %s13, 1
    %p108 = scmp.ne.s32.totalorder %s103, %s105
    %p109 = scmp.eq.s32.totalorder %s13, 0
    %p110 = por %p108, %p109
    %p111 = scmp.ne.s32.totalorder %s103, %s105
    %p112 = scmp.eq.s32.totalorder %s18, 1
    %p113 = por %p111, %p112
    %p114 = scmp.ne.s32.totalorder %s105, %s106
    %p115 = scmp.eq.s32.totalorder %s18, 0
    %p116 = por %p114, %p115
    %p117 = scmp.ne.s32.totalorder %s105, %s106
    %p118 = scmp.eq.s32.totalorder %s19, 1
    %p119 = por %p117, %p118
    %p121 = scmp.ne.s32.totalorder %s106, %s120
    %p122 = scmp.eq.s32.totalorder %s19, 0
    %p123 = por %p121, %p122
    %s125 = sadd.s32 %s124, 1
    %p128 = scmp.eq.s32.totalorder %s13, 1
    %p129 = scmp.ne.s32.totalorder %s124, %s126
    %p130 = scmp.eq.s32.totalorder %s13, 0
    %p131 = por %p129, %p130
    %p132 = scmp.ne.s32.totalorder %s124, %s126
    %p133 = scmp.eq.s32.totalorder %s18, 1
    %p134 = por %p132, %p133
    %p135 = scmp.ne.s32.totalorder %s126, %s127
    %p136 = scmp.eq.s32.totalorder %s18, 0
    %p137 = por %p135, %p136
    %p138 = scmp.ne.s32.totalorder %s126, %s127
    %p139 = scmp.eq.s32.totalorder %s19, 1
    %p140 = por %p138, %p139
    %p142 = scmp.ne.s32.totalorder %s127, %s141
    %p143 = scmp.eq.s32.totalorder %s19, 0
    %p144 = por %p142, %p143
    %s146 = sadd.s32 %s145, 1
    %p149 = scmp.eq.s32.totalorder %s13, 1
    %p150 = scmp.ne.s32.totalorder %s145, %s147
    %p151 = scmp.eq.s32.totalorder %s13, 0
    %p152 = por %p150, %p151
    %p153 = scmp.ne.s32.totalorder %s145, %s147
    %p154 = scmp.eq.s32.totalorder %s18, 1
    %p155 = por %p153, %p154
    %p156 = scmp.ne.s32.totalorder %s147, %s148
    %p157 = scmp.eq.s32.totalorder %s18, 0
    %p158 = por %p156, %p157
    %p159 = scmp.ne.s32.totalorder %s147, %s148
    %p160 = scmp.eq.s32.totalorder %s19, 1
    %p161 = por %p159, %p160
    %p163 = scmp.ne.s32.totalorder %s148, %s162
    %p164 = scmp.eq.s32.totalorder %s19, 0
    %p165 = por %p163, %p164
    %s167 = sadd.s32 %s166, 1
    %p170 = scmp.eq.s32.totalorder %s13, 1
    %p171 = scmp.ne.s32.totalorder %s166, %s168
    %p172 = scmp.eq.s32.totalorder %s13, 0
    %p173 = por %p171, %p172
    %p174 = scmp.ne.s32.totalorder %s166, %s168
    %p175 = scmp.eq.s32.totalorder %s18, 1
    %p176 = por %p174, %p175
    %p177 = scmp.ne.s32.totalorder %s168, %s169
    %p178 = scmp.eq.s32.totalorder %s18, 0
    %p179 = por %p177, %p178
    %p180 = scmp.ne.s32.totalorder %s168, %s169
    %p181 = scmp.eq.s32.totalorder %s19, 1
    %p182 = por %p180, %p181
    %p184 = scmp.ne.s32.totalorder %s169, %s183
    %p185 = scmp.eq.s32.totalorder %s19, 0
    %p186 = por %p184, %p185
    %s187 = ssub.s32 %s20, %s32
    %s188 = ssub.s32 %s21, %s28
    %s189 = sor.u32 %s187, %s188
    %p190 = scmp.eq.s32.totalorder %s189, 0
    %s192 = sadd.s32 %s191, 1
    %s193 = scalar_select %p190, %s191, %s192
    %p196 = pneg %p190
    %p197 = scmp.eq.s32.totalorder %s13, 1
    %p198 = por %p196, %p197
    %p199 = scmp.ne.s32.totalorder %s191, %s194
    %p200 = scmp.eq.s32.totalorder %s13, 0
    %p201 = por %p199, %p200
    %p202 = scmp.ne.s32.totalorder %s191, %s194
    %p203 = scmp.eq.s32.totalorder %s18, 1
    %p204 = por %p202, %p203
    %p205 = scmp.ne.s32.totalorder %s194, %s195
    %p206 = scmp.eq.s32.totalorder %s18, 0
    %p207 = por %p205, %p206
    %p208 = scmp.ne.s32.totalorder %s194, %s195
    %p209 = scmp.eq.s32.totalorder %s19, 1
    %p210 = por %p208, %p209
    %p212 = scmp.ne.s32.totalorder %s195, %s211
    %p213 = scmp.eq.s32.totalorder %s19, 0
    %p214 = por %p212, %p213
    %p215 = scmp.le.s32.totalorder 1, %s13
    %p216 = scmp.lt.s32.totalorder %s13, 3
    %p217 = pnand %p215, %p216
    %p218 = pneg %p217
    // Predicated region
    $region9: #{rotation_model_pallas.1} parent=5 // pred_check
      _
    $region10: #{rotation_model_pallas.1} parent=5 // pred_check_branch
      %220 = sbr.rel (%p217) target = $region12
    $region11: #{rotation_model_pallas.1} parent=5 // pred_region
      %s221 = ssub.s32 %s13, 1
      // Predicated region
      $region13: #{rotation_model_pallas.1} parent=11 // pred_check
        %p222 = pneg %p74
      $region14: #{rotation_model_pallas.1} parent=11 // pred_check_branch
        %224 = sbr.rel (%p222) target = $region16
      $region15: #{rotation_model_pallas.1} parent=11 // pred_region
        _
      $region16: #{rotation_model_pallas.1} parent=11 // pred_fallthru
        _
      // Predicated region
      $region17: #{rotation_model_pallas.1} parent=11 // pred_check
        %p225 = pneg %p95
      $region18: #{rotation_model_pallas.1} parent=11 // pred_check_branch
        %227 = sbr.rel (%p225) target = $region20
      $region19: #{rotation_model_pallas.1} parent=11 // pred_region
        _
      $region20: #{rotation_model_pallas.1} parent=11 // pred_fallthru
        _
      // Predicated region
      $region21: #{rotation_model_pallas.1} parent=11 // pred_check
        %p228 = pneg %p116
      $region22: #{rotation_model_pallas.1} parent=11 // pred_check_branch
        %230 = sbr.rel (%p228) target = $region24
      $region23: #{rotation_model_pallas.1} parent=11 // pred_region
        _
      $region24: #{rotation_model_pallas.1} parent=11 // pred_fallthru
        _
      // Predicated region
      $region25: #{rotation_model_pallas.1} parent=11 // pred_check
        %p231 = pneg %p137
      $region26: #{rotation_model_pallas.1} parent=11 // pred_check_branch
        %233 = sbr.rel (%p231) target = $region28
      $region27: #{rotation_model_pallas.1} parent=11 // pred_region
        _
      $region28: #{rotation_model_pallas.1} parent=11 // pred_fallthru
        _
      // Predicated region
      $region29: #{rotation_model_pallas.1} parent=11 // pred_check
        %p234 = pneg %p158
      $region30: #{rotation_model_pallas.1} parent=11 // pred_check_branch
        %236 = sbr.rel (%p234) target = $region32
      $region31: #{rotation_model_pallas.1} parent=11 // pred_region
        _
      $region32: #{rotation_model_pallas.1} parent=11 // pred_fallthru
        _
      // Predicated region
      $region33: #{rotation_model_pallas.1} parent=11 // pred_check
        %p237 = pneg %p179
      $region34: #{rotation_model_pallas.1} parent=11 // pred_check_branch
        %239 = sbr.rel (%p237) target = $region36
      $region35: #{rotation_model_pallas.1} parent=11 // pred_region
        _
      $region36: #{rotation_model_pallas.1} parent=11 // pred_fallthru
        _
    $region12: #{rotation_model_pallas.1} parent=5 // pred_fallthru
      _
    %p240 = scmp.lt.s32.totalorder %s13, 2
    // Predicated region
    $region37: #{rotation_model_pallas.1} parent=5 // pred_check
      %p241 = pneg %p240
    $region38: #{rotation_model_pallas.1} parent=5 // pred_check_branch
      %243 = sbr.rel (%p241) target = $region40
    $region39: #{rotation_model_pallas.1} parent=5 // pred_region
      // Predicated region
      $region41: #{rotation_model_pallas.1} parent=39 // pred_check
        %p244 = pneg %p47
      $region42: #{rotation_model_pallas.1} parent=39 // pred_check_branch
        %246 = sbr.rel (%p244) target = $region44
      $region43: #{rotation_model_pallas.1} parent=39 // pred_region
        %p247 = scmp.lt.s32.totalorder %s20, 1
        %s248 = scalar_select %p247, %s20, 1
        %p249 = scmp.lt.s32.totalorder %s21, 0
        %s250 = scalar_select %p249, %s21, 0
        %s251 = smul.addr %s248, 2
        %s252 = sadd.s32 %s250, %s251
        %s253 = smul.addr %s252, 8
        %s254 = scalar_lea.vmem %s0, %s253
      $region44: #{rotation_model_pallas.1} parent=39 // pred_fallthru
        _
    $region40: #{rotation_model_pallas.1} parent=5 // pred_fallthru
      _
    %p255 = scmp.le.s32.totalorder 1, %s13
    %p256 = scmp.lt.s32.totalorder %s13, 3
    %p257 = pnand %p255, %p256
    %p258 = pneg %p257
    // Predicated region
    $region45: #{rotation_model_pallas.1} parent=5 // pred_check
      _
    $region46: #{rotation_model_pallas.1} parent=5 // pred_check_branch
      %260 = sbr.rel (%p257) target = $region48
    $region47: #{rotation_model_pallas.1} parent=5 // pred_region
      %s261 = ssub.s32 %s13, 1
      %p262 = scmp.lt.s32.totalorder %s22, 1
      %s263 = scalar_select %p262, %s22, 1
      %p264 = scmp.lt.s32.totalorder %s23, 0
      %s265 = scalar_select %p264, %s23, 0
      %s266 = smul.addr %s263, 2
      %s267 = sadd.s32 %s265, %s266
      %s268 = smul.addr %s267, 8
      %s269 = scalar_lea.vmem %s0, %s268
      %p270 = pneg %p53
      %p271 = pneg %p50
      %p272 = pneg %p74
      %p273 = pneg %p71
      %p274 = pneg %p95
      %p275 = pneg %p92
      %p276 = pneg %p116
      %p277 = pneg %p113
      %p278 = pneg %p137
      %p279 = pneg %p134
      %p280 = pneg %p158
      %p281 = pneg %p155
      %p282 = pneg %p179
      %p283 = pneg %p176
      %p284 = pneg %p207
      %p285 = pneg %p204
      %p286 = scmp.lt.s32.totalorder %s22, 1
      %s287 = scalar_select %p286, %s22, 1
      %p288 = scmp.lt.s32.totalorder %s23, 0
      %s289 = scalar_select %p288, %s23, 0
      %s290 = smul.addr %s287, 2
      %s291 = sadd.s32 %s289, %s290
      %s292 = smul.addr %s291, 4
      %s293 = scalar_lea.vmem %s7, %s292
      %p294 = scmp.lt.s32.totalorder %s22, 1
      %s295 = scalar_select %p294, %s22, 1
      %p296 = scmp.lt.s32.totalorder %s23, 0
      %s297 = scalar_select %p296, %s23, 0
      %s298 = smul.addr %s295, 2
      %s299 = sadd.s32 %s297, %s298
      %s300 = smul.addr %s299, 8
      %s301 = scalar_lea.vmem %s0, %s300
      %p302 = scmp.lt.s32.totalorder %s22, 1
      %s303 = scalar_select %p302, %s22, 1
      %p304 = scmp.lt.s32.totalorder %s23, 0
      %s305 = scalar_select %p304, %s23, 0
      %s306 = smul.addr %s303, 2
      %s307 = sadd.s32 %s305, %s306
      %s308 = smul.addr %s307, 4
      %s309 = scalar_lea.vmem %s7, %s308
      %v311 = vld [vmem:[%s1] sm:$0xf]
      %v312 = vld [vmem:[%s1 + $0x4] sm:$0xf]
      %v313 = vld [vmem:[%s1 + $0x8] sm:$0xf]
      %v314 = vld [vmem:[%s1 + $0xc] sm:$0xf]
      %v315 = vld [vmem:[%s2] sm:$0xff]
      %v316 = vld [vmem:[%s2 + $0x8] sm:$0xff]
      %v317 = vld [vmem:[%s2 + $0x10] sm:$0xff]
      %v318 = vld [vmem:[%s2 + $0x18] sm:$0xff]
      %v319 = vld [vmem:[%s5] sm:$0xf]
      %v320 = vld [vmem:[%s5 + $0x4] sm:$0x1]
      %v321 = vld [vmem:[%s6] sm:$0xff]
      %v322 = vld [vmem:[%s6 + $0x8] sm:$0x1]
      %v323 = vld [vmem:[%s3] sm:$0xf]
      %v324 = vld [vmem:[%s3 + $0x4] sm:$0xf]
      %v325 = vld [vmem:[%s3 + $0x8] sm:$0xf]
      %v326 = vld [vmem:[%s3 + $0xc] sm:$0xf]
      %s327 = scalar_lea.vmem %s3, 16
      %v328 = vld [vmem:[%s327] sm:$0xf]
      %v329 = vld [vmem:[%s327 + $0x4] sm:$0xf]
      %v330 = vld [vmem:[%s327 + $0x8] sm:$0xf]
      %v331 = vld [vmem:[%s327 + $0xc] sm:$0xf]
      %s332 = scalar_lea.vmem %s3, 32
      %v333 = vld [vmem:[%s332] sm:$0xf]
      %v334 = vld [vmem:[%s332 + $0x4] sm:$0xf]
      %v335 = vld [vmem:[%s332 + $0x8] sm:$0xf]
      %v336 = vld [vmem:[%s332 + $0xc] sm:$0xf]
      %s337 = scalar_lea.vmem %s3, 48
      %v338 = vld [vmem:[%s337] sm:$0xf]
      %v339 = vld [vmem:[%s337 + $0x4] sm:$0xf]
      %v340 = vld [vmem:[%s337 + $0x8] sm:$0xf]
      %v341 = vld [vmem:[%s337 + $0xc] sm:$0xf]
      %v342 = vld [vmem:[%s4] sm:$0xff]
      %v343 = vld [vmem:[%s4 + $0x8] sm:$0xff]
      %v344 = vld [vmem:[%s4 + $0x10] sm:$0xff]
      %v345 = vld [vmem:[%s4 + $0x18] sm:$0xff]
      %s346 = scalar_lea.vmem %s4, 32
      %v347 = vld [vmem:[%s346] sm:$0xff]
      %v348 = vld [vmem:[%s346 + $0x8] sm:$0xff]
      %v349 = vld [vmem:[%s346 + $0x10] sm:$0xff]
      %v350 = vld [vmem:[%s346 + $0x18] sm:$0xff]
      %s351 = scalar_lea.vmem %s4, 64
      %v352 = vld [vmem:[%s351] sm:$0xff]
      %v353 = vld [vmem:[%s351 + $0x8] sm:$0xff]
      %v354 = vld [vmem:[%s351 + $0x10] sm:$0xff]
      %v355 = vld [vmem:[%s351 + $0x18] sm:$0xff]
      %s356 = scalar_lea.vmem %s4, 96
      %v357 = vld [vmem:[%s356] sm:$0xff]
      %v358 = vld [vmem:[%s356 + $0x8] sm:$0xff]
      %v359 = vld [vmem:[%s356 + $0x10] sm:$0xff]
      %v360 = vld [vmem:[%s356 + $0x18] sm:$0xff]
      %v361 = vld [vmem:[%s301] sm:$0xff]
      %v362 = vld [vmem:[%s301 + $0x8] sm:$0x1]
      %v363 = vpack.c.bf16 %v362, %v361
      %365 = vset.pattern.permute.xlu0 0
      %366 = vperm.xlu0 %365, %v315
      %v367 = vpop.permute.xlu0 %366
      %370 = vset.pattern.permute.xlu0 0
      %371 = vperm.xlu0 %370, %v316
      %v372 = vpop.permute.xlu0 %371
      %375 = vset.pattern.permute.xlu0 0
      %376 = vperm.xlu0 %375, %v317
      %v377 = vpop.permute.xlu0 %376
      %380 = vset.pattern.permute.xlu0 0
      %381 = vperm.xlu0 %380, %v318
      %v382 = vpop.permute.xlu0 %381
      %v388 = vunpack.c.l.b16 %v311
      %v389 = vunpack.c.l.b16 %v312
      %v390 = vunpack.c.l.b16 %v313
      %v391 = vunpack.c.l.b16 %v314
      %v392 = vpack.c.b16 %v389, %v388
      %v393 = vpack.c.b16 %v391, %v390
      %vm394 = vcmask 72704
      %v396 = vsel %vm394, %v392, 0
      %v399 = vsel %vm394, %v393, 0
      %vm401 = vcmask 1043456
      %vm402 = vcmask 1044480
      %v403 = vsel %vm401, 4294967295, 65535
      %v404 = vsel %vm402, %v403, 0
      %v406 = vand.u32 %v363, %v404
      %408 = vmatprep.subr.bf16.mxu0 0
      %409 = vmatpush1.bf16.msra.mxu0 0
      %410 = vmatprep.subr.bf16.mxu0 0
      %411 = vmatpush1.bf16.msra.mxu0 0
      %412 = vmatprep.subr.bf16.mxu0 0
      %413 = vmatpush1.bf16.msra.mxu0 0
      %414 = vmatprep.subr.bf16.mxu0 0
      %415 = vmatpush1.bf16.msra.mxu0 0
      %416 = vmatprep.subr.bf16.mxu0 0
      %417 = vmatpush1.bf16.msra.mxu0 0
      %418 = vmatprep.subr.bf16.mxu0 0
      %419 = vmatpush1.bf16.msra.mxu0 0
      %420 = vmatprep.subr.bf16.mxu0 0
      %421 = vmatpush1.bf16.msra.mxu0 0
      %422 = vmatprep.subr.bf16.mxu0 0
      %423 = vmatpush1.bf16.msra.mxu0 %v406
      %424 = vmatprep.subr.bf16.mxu0 0
      %425 = vmatpush2.bf16.msra.mxu0 0
      %426 = vmatprep.subr.bf16.mxu0 0
      %427 = vmatpush2.bf16.msra.mxu0 0
      %428 = vmatprep.subr.bf16.mxu0 0
      %429 = vmatpush2.bf16.msra.mxu0 0
      %430 = vmatprep.subr.bf16.mxu0 0
      %431 = vmatpush2.bf16.msra.mxu0 0
      %432 = vmatprep.subr.bf16.mxu0 0
      %433 = vmatpush2.bf16.msra.mxu0 0
      %434 = vmatprep.subr.bf16.mxu0 0
      %435 = vmatpush2.bf16.msra.mxu0 0
      %436 = vmatprep.subr.bf16.mxu0 0
      %437 = vmatpush2.bf16.msra.mxu0 0
      %438 = vmatprep.subr.bf16.mxu0 0
      %439 = vmatpush2.bf16.msra.mxu0 0
      %440 = vmatprep.mubr.bf16.mxu0 0
      %441 = vmatmul.mubr.bf16.gmra.mxu0 %v396
      %v442 = vpop.f32.mrf.mxu0
      %v443 = vadd.f32 %v367, %v442
      %v444 = vpop.f32.mrf.mxu0
      %v445 = vpop.f32.mrf.mxu0
      %v446 = vadd.f32 %v372, %v445
      %v447 = vpop.f32.mrf.mxu0
      %448 = vmatprep.mubr.bf16.mxu0 0
      %449 = vmatmul.mubr.bf16.gmra.mxu0 %v399
      %v450 = vpop.f32.mrf.mxu0
      %v451 = vadd.f32 %v377, %v450
      %v452 = vpop.f32.mrf.mxu0
      %v453 = vpop.f32.mrf.mxu0
      %v454 = vadd.f32 %v382, %v453
      %v455 = vpop.f32.mrf.mxu0
      %456 = vdwg.mxu0
      %v457 = vmax.f32 %v443, 0.0
      %v458 = vmax.f32 %v446, 0.0
      %v459 = vmax.f32 %v451, 0.0
      %v460 = vmax.f32 %v454, 0.0
      %v461 = vpack.c.bf16 %v458, %v457
      %v462 = vpack.c.bf16 %v460, %v459
      %464 = vset.pattern.permute.xlu0 0
      %465 = vperm.xlu0 %464, %v342
      %v466 = vpop.permute.xlu0 %465
      %469 = vset.pattern.permute.xlu0 0
      %470 = vperm.xlu0 %469, %v343
      %v471 = vpop.permute.xlu0 %470
      %474 = vset.pattern.permute.xlu0 0
      %475 = vperm.xlu0 %474, %v344
      %v476 = vpop.permute.xlu0 %475
      %479 = vset.pattern.permute.xlu0 0
      %480 = vperm.xlu0 %479, %v345
      %v481 = vpop.permute.xlu0 %480
      %v487 = vunpack.c.l.b16 %v323
      %v488 = vunpack.c.l.b16 %v324
      %v489 = vunpack.c.l.b16 %v325
      %v490 = vunpack.c.l.b16 %v326
      %v491 = vpack.c.b16 %v488, %v487
      %v492 = vpack.c.b16 %v490, %v489
      %vm493 = vcmask 261120
      %v495 = vsel %vm493, %v491, 0
      %v498 = vsel %vm493, %v492, 0
      %500 = vmatprep.subr.bf16.mxu0 0
      %501 = vmatpush1.bf16.msra.mxu0 0
      %502 = vmatprep.subr.bf16.mxu0 0
      %503 = vmatpush1.bf16.msra.mxu0 0
      %504 = vmatprep.subr.bf16.mxu0 0
      %505 = vmatpush1.bf16.msra.mxu0 0
      %506 = vmatprep.subr.bf16.mxu0 0
      %507 = vmatpush1.bf16.msra.mxu0 0
      %508 = vmatprep.subr.bf16.mxu0 0
      %509 = vmatpush1.bf16.msra.mxu0 0
      %510 = vmatprep.subr.bf16.mxu0 0
      %511 = vmatpush1.bf16.msra.mxu0 0
      %512 = vmatprep.subr.bf16.mxu0 0
      %513 = vmatpush1.bf16.msra.mxu0 %v462
      %514 = vmatprep.subr.bf16.mxu0 0
      %515 = vmatpush1.bf16.msra.mxu0 %v461
      %516 = vmatprep.subr.bf16.mxu0 0
      %517 = vmatpush2.bf16.msra.mxu0 0
      %518 = vmatprep.subr.bf16.mxu0 0
      %519 = vmatpush2.bf16.msra.mxu0 0
      %520 = vmatprep.subr.bf16.mxu0 0
      %521 = vmatpush2.bf16.msra.mxu0 0
      %522 = vmatprep.subr.bf16.mxu0 0
      %523 = vmatpush2.bf16.msra.mxu0 0
      %524 = vmatprep.subr.bf16.mxu0 0
      %525 = vmatpush2.bf16.msra.mxu0 0
      %526 = vmatprep.subr.bf16.mxu0 0
      %527 = vmatpush2.bf16.msra.mxu0 0
      %528 = vmatprep.subr.bf16.mxu0 0
      %529 = vmatpush2.bf16.msra.mxu0 0
      %530 = vmatprep.subr.bf16.mxu0 0
      %531 = vmatpush2.bf16.msra.mxu0 0
      %532 = vmatprep.mubr.bf16.mxu0 0
      %533 = vmatmul.mubr.bf16.gmra.mxu0 %v495
      %v534 = vpop.f32.mrf.mxu0
      %v535 = vadd.f32 %v466, %v534
      %v536 = vpop.f32.mrf.mxu0
      %v537 = vpop.f32.mrf.mxu0
      %v538 = vadd.f32 %v471, %v537
      %v539 = vpop.f32.mrf.mxu0
      %540 = vmatprep.mubr.bf16.mxu0 0
      %541 = vmatmul.mubr.bf16.gmra.mxu0 %v498
      %v542 = vpop.f32.mrf.mxu0
      %v543 = vadd.f32 %v476, %v542
      %v544 = vpop.f32.mrf.mxu0
      %v545 = vpop.f32.mrf.mxu0
      %v546 = vadd.f32 %v481, %v545
      %v547 = vpop.f32.mrf.mxu0
      %548 = vdwg.mxu0
      %v549 = vmax.f32 %v535, 0.0
      %v550 = vmax.f32 %v538, 0.0
      %v551 = vmax.f32 %v543, 0.0
      %v552 = vmax.f32 %v546, 0.0
      %v553 = vpack.c.bf16 %v550, %v549
      %v554 = vpack.c.bf16 %v552, %v551
      %556 = vset.pattern.permute.xlu0 0
      %557 = vperm.xlu0 %556, %v347
      %v558 = vpop.permute.xlu0 %557
      %561 = vset.pattern.permute.xlu0 0
      %562 = vperm.xlu0 %561, %v348
      %v563 = vpop.permute.xlu0 %562
      %566 = vset.pattern.permute.xlu0 0
      %567 = vperm.xlu0 %566, %v349
      %v568 = vpop.permute.xlu0 %567
      %571 = vset.pattern.permute.xlu0 0
      %572 = vperm.xlu0 %571, %v350
      %v573 = vpop.permute.xlu0 %572
      %v579 = vunpack.c.l.b16 %v328
      %v580 = vunpack.c.l.b16 %v329
      %v581 = vunpack.c.l.b16 %v330
      %v582 = vunpack.c.l.b16 %v331
      %v583 = vpack.c.b16 %v580, %v579
      %v584 = vpack.c.b16 %v582, %v581
      %v586 = vsel %vm493, %v583, 0
      %v589 = vsel %vm493, %v584, 0
      %591 = vmatprep.subr.bf16.mxu0 0
      %592 = vmatpush1.bf16.msra.mxu0 0
      %593 = vmatprep.subr.bf16.mxu0 0
      %594 = vmatpush1.bf16.msra.mxu0 0
      %595 = vmatprep.subr.bf16.mxu0 0
      %596 = vmatpush1.bf16.msra.mxu0 0
      %597 = vmatprep.subr.bf16.mxu0 0
      %598 = vmatpush1.bf16.msra.mxu0 0
      %599 = vmatprep.subr.bf16.mxu0 0
      %600 = vmatpush1.bf16.msra.mxu0 0
      %601 = vmatprep.subr.bf16.mxu0 0
      %602 = vmatpush1.bf16.msra.mxu0 0
      %603 = vmatprep.subr.bf16.mxu0 0
      %604 = vmatpush1.bf16.msra.mxu0 %v554
      %605 = vmatprep.subr.bf16.mxu0 0
      %606 = vmatpush1.bf16.msra.mxu0 %v553
      %607 = vmatprep.subr.bf16.mxu0 0
      %608 = vmatpush2.bf16.msra.mxu0 0
      %609 = vmatprep.subr.bf16.mxu0 0
      %610 = vmatpush2.bf16.msra.mxu0 0
      %611 = vmatprep.subr.bf16.mxu0 0
      %612 = vmatpush2.bf16.msra.mxu0 0
      %613 = vmatprep.subr.bf16.mxu0 0
      %614 = vmatpush2.bf16.msra.mxu0 0
      %615 = vmatprep.subr.bf16.mxu0 0
      %616 = vmatpush2.bf16.msra.mxu0 0
      %617 = vmatprep.subr.bf16.mxu0 0
      %618 = vmatpush2.bf16.msra.mxu0 0
      %619 = vmatprep.subr.bf16.mxu0 0
      %620 = vmatpush2.bf16.msra.mxu0 0
      %621 = vmatprep.subr.bf16.mxu0 0
      %622 = vmatpush2.bf16.msra.mxu0 0
      %623 = vmatprep.mubr.bf16.mxu0 0
      %624 = vmatmul.mubr.bf16.gmra.mxu0 %v586
      %v625 = vpop.f32.mrf.mxu0
      %v626 = vadd.f32 %v558, %v625
      %v627 = vpop.f32.mrf.mxu0
      %v628 = vpop.f32.mrf.mxu0
      %v629 = vadd.f32 %v563, %v628
      %v630 = vpop.f32.mrf.mxu0
      %631 = vmatprep.mubr.bf16.mxu0 0
      %632 = vmatmul.mubr.bf16.gmra.mxu0 %v589
      %v633 = vpop.f32.mrf.mxu0
      %v634 = vadd.f32 %v568, %v633
      %v635 = vpop.f32.mrf.mxu0
      %v636 = vpop.f32.mrf.mxu0
      %v637 = vadd.f32 %v573, %v636
      %v638 = vpop.f32.mrf.mxu0
      %639 = vdwg.mxu0
      %v640 = vmax.f32 %v626, 0.0
      %v641 = vmax.f32 %v629, 0.0
      %v642 = vmax.f32 %v634, 0.0
      %v643 = vmax.f32 %v637, 0.0
      %v644 = vadd.f32 %v457, %v640
      %v645 = vadd.f32 %v458, %v641
      %v646 = vadd.f32 %v459, %v642
      %v647 = vadd.f32 %v460, %v643
      %v648 = vpack.c.bf16 %v645, %v644
      %v649 = vpack.c.bf16 %v647, %v646
      %651 = vset.pattern.permute.xlu0 0
      %652 = vperm.xlu0 %651, %v352
      %v653 = vpop.permute.xlu0 %652
      %656 = vset.pattern.permute.xlu0 0
      %657 = vperm.xlu0 %656, %v353
      %v658 = vpop.permute.xlu0 %657
      %661 = vset.pattern.permute.xlu0 0
      %662 = vperm.xlu0 %661, %v354
      %v663 = vpop.permute.xlu0 %662
      %666 = vset.pattern.permute.xlu0 0
      %667 = vperm.xlu0 %666, %v355
      %v668 = vpop.permute.xlu0 %667
      %v674 = vunpack.c.l.b16 %v333
      %v675 = vunpack.c.l.b16 %v334
      %v676 = vunpack.c.l.b16 %v335
      %v677 = vunpack.c.l.b16 %v336
      %v678 = vpack.c.b16 %v675, %v674
      %v679 = vpack.c.b16 %v677, %v676
      %v681 = vsel %vm493, %v678, 0
      %v684 = vsel %vm493, %v679, 0
      %686 = vmatprep.subr.bf16.mxu0 0
      %687 = vmatpush1.bf16.msra.mxu0 0
      %688 = vmatprep.subr.bf16.mxu0 0
      %689 = vmatpush1.bf16.msra.mxu0 0
      %690 = vmatprep.subr.bf16.mxu0 0
      %691 = vmatpush1.bf16.msra.mxu0 0
      %692 = vmatprep.subr.bf16.mxu0 0
      %693 = vmatpush1.bf16.msra.mxu0 0
      %694 = vmatprep.subr.bf16.mxu0 0
      %695 = vmatpush1.bf16.msra.mxu0 0
      %696 = vmatprep.subr.bf16.mxu0 0
      %697 = vmatpush1.bf16.msra.mxu0 0
      %698 = vmatprep.subr.bf16.mxu0 0
      %699 = vmatpush1.bf16.msra.mxu0 %v649
      %700 = vmatprep.subr.bf16.mxu0 0
      %701 = vmatpush1.bf16.msra.mxu0 %v648
      %702 = vmatprep.subr.bf16.mxu0 0
      %703 = vmatpush2.bf16.msra.mxu0 0
      %704 = vmatprep.subr.bf16.mxu0 0
      %705 = vmatpush2.bf16.msra.mxu0 0
      %706 = vmatprep.subr.bf16.mxu0 0
      %707 = vmatpush2.bf16.msra.mxu0 0
      %708 = vmatprep.subr.bf16.mxu0 0
      %709 = vmatpush2.bf16.msra.mxu0 0
      %710 = vmatprep.subr.bf16.mxu0 0
      %711 = vmatpush2.bf16.msra.mxu0 0
      %712 = vmatprep.subr.bf16.mxu0 0
      %713 = vmatpush2.bf16.msra.mxu0 0
      %714 = vmatprep.subr.bf16.mxu0 0
      %715 = vmatpush2.bf16.msra.mxu0 0
      %716 = vmatprep.subr.bf16.mxu0 0
      %717 = vmatpush2.bf16.msra.mxu0 0
      %718 = vmatprep.mubr.bf16.mxu0 0
      %719 = vmatmul.mubr.bf16.gmra.mxu0 %v681
      %v720 = vpop.f32.mrf.mxu0
      %v721 = vadd.f32 %v653, %v720
      %v722 = vpop.f32.mrf.mxu0
      %v723 = vpop.f32.mrf.mxu0
      %v724 = vadd.f32 %v658, %v723
      %v725 = vpop.f32.mrf.mxu0
      %726 = vmatprep.mubr.bf16.mxu0 0
      %727 = vmatmul.mubr.bf16.gmra.mxu0 %v684
      %v728 = vpop.f32.mrf.mxu0
      %v729 = vadd.f32 %v663, %v728
      %v730 = vpop.f32.mrf.mxu0
      %v731 = vpop.f32.mrf.mxu0
      %v732 = vadd.f32 %v668, %v731
      %v733 = vpop.f32.mrf.mxu0
      %734 = vdwg.mxu0
      %v735 = vmax.f32 %v721, 0.0
      %v736 = vmax.f32 %v724, 0.0
      %v737 = vmax.f32 %v729, 0.0
      %v738 = vmax.f32 %v732, 0.0
      %v739 = vpack.c.bf16 %v736, %v735
      %v740 = vpack.c.bf16 %v738, %v737
      %742 = vset.pattern.permute.xlu0 0
      %743 = vperm.xlu0 %742, %v357
      %v744 = vpop.permute.xlu0 %743
      %747 = vset.pattern.permute.xlu0 0
      %748 = vperm.xlu0 %747, %v358
      %v749 = vpop.permute.xlu0 %748
      %752 = vset.pattern.permute.xlu0 0
      %753 = vperm.xlu0 %752, %v359
      %v754 = vpop.permute.xlu0 %753
      %757 = vset.pattern.permute.xlu0 0
      %758 = vperm.xlu0 %757, %v360
      %v759 = vpop.permute.xlu0 %758
      %v765 = vunpack.c.l.b16 %v338
      %v766 = vunpack.c.l.b16 %v339
      %v767 = vunpack.c.l.b16 %v340
      %v768 = vunpack.c.l.b16 %v341
      %v769 = vpack.c.b16 %v766, %v765
      %v770 = vpack.c.b16 %v768, %v767
      %v772 = vsel %vm493, %v769, 0
      %v775 = vsel %vm493, %v770, 0
      %777 = vmatprep.subr.bf16.mxu0 0
      %778 = vmatpush1.bf16.msra.mxu0 0
      %779 = vmatprep.subr.bf16.mxu0 0
      %780 = vmatpush1.bf16.msra.mxu0 0
      %781 = vmatprep.subr.bf16.mxu0 0
      %782 = vmatpush1.bf16.msra.mxu0 0
      %783 = vmatprep.subr.bf16.mxu0 0
      %784 = vmatpush1.bf16.msra.mxu0 0
      %785 = vmatprep.subr.bf16.mxu0 0
      %786 = vmatpush1.bf16.msra.mxu0 0
      %787 = vmatprep.subr.bf16.mxu0 0
      %788 = vmatpush1.bf16.msra.mxu0 0
      %789 = vmatprep.subr.bf16.mxu0 0
      %790 = vmatpush1.bf16.msra.mxu0 %v740
      %791 = vmatprep.subr.bf16.mxu0 0
      %792 = vmatpush1.bf16.msra.mxu0 %v739
      %793 = vmatprep.subr.bf16.mxu0 0
      %794 = vmatpush2.bf16.msra.mxu0 0
      %795 = vmatprep.subr.bf16.mxu0 0
      %796 = vmatpush2.bf16.msra.mxu0 0
      %797 = vmatprep.subr.bf16.mxu0 0
      %798 = vmatpush2.bf16.msra.mxu0 0
      %799 = vmatprep.subr.bf16.mxu0 0
      %800 = vmatpush2.bf16.msra.mxu0 0
      %801 = vmatprep.subr.bf16.mxu0 0
      %802 = vmatpush2.bf16.msra.mxu0 0
      %803 = vmatprep.subr.bf16.mxu0 0
      %804 = vmatpush2.bf16.msra.mxu0 0
      %805 = vmatprep.subr.bf16.mxu0 0
      %806 = vmatpush2.bf16.msra.mxu0 0
      %807 = vmatprep.subr.bf16.mxu0 0
      %808 = vmatpush2.bf16.msra.mxu0 0
      %809 = vmatprep.mubr.bf16.mxu0 0
      %810 = vmatmul.mubr.bf16.gmra.mxu0 %v772
      %v811 = vpop.f32.mrf.mxu0
      %v812 = vadd.f32 %v744, %v811
      %v813 = vpop.f32.mrf.mxu0
      %v814 = vpop.f32.mrf.mxu0
      %v815 = vadd.f32 %v749, %v814
      %v816 = vpop.f32.mrf.mxu0
      %817 = vmatprep.mubr.bf16.mxu0 0
      %818 = vmatmul.mubr.bf16.gmra.mxu0 %v775
      %v819 = vpop.f32.mrf.mxu0
      %v820 = vadd.f32 %v754, %v819
      %v821 = vpop.f32.mrf.mxu0
      %v822 = vpop.f32.mrf.mxu0
      %v823 = vadd.f32 %v759, %v822
      %v824 = vpop.f32.mrf.mxu0
      %825 = vdwg.mxu0
      %v826 = vmax.f32 %v812, 0.0
      %v827 = vmax.f32 %v815, 0.0
      %v828 = vmax.f32 %v820, 0.0
      %v829 = vmax.f32 %v823, 0.0
      %v830 = vadd.f32 %v644, %v826
      %v831 = vadd.f32 %v645, %v827
      %v832 = vadd.f32 %v646, %v828
      %v833 = vadd.f32 %v647, %v829
      %v834 = vpack.c.bf16 %v831, %v830
      %v835 = vpack.c.bf16 %v833, %v832
      %837 = vset.pattern.permute.xlu0 0
      %838 = vperm.xlu0 %837, %v321
      %v839 = vpop.permute.xlu0 %838
      %842 = vset.pattern.permute.xlu0 0
      %843 = vperm.xlu0 %842, %v322
      %v844 = vpop.permute.xlu0 %843
      %v848 = vunpack.c.l.b16 %v319
      %v849 = vunpack.c.l.b16 %v320
      %v850 = vpack.c.b16 %v849, %v848
      %v852 = vsel %vm493, %v850, 0
      %854 = vmatprep.subr.bf16.mxu0 0
      %855 = vmatpush1.bf16.msra.mxu0 0
      %856 = vmatprep.subr.bf16.mxu0 0
      %857 = vmatpush1.bf16.msra.mxu0 0
      %858 = vmatprep.subr.bf16.mxu0 0
      %859 = vmatpush1.bf16.msra.mxu0 0
      %860 = vmatprep.subr.bf16.mxu0 0
      %861 = vmatpush1.bf16.msra.mxu0 0
      %862 = vmatprep.subr.bf16.mxu0 0
      %863 = vmatpush1.bf16.msra.mxu0 0
      %864 = vmatprep.subr.bf16.mxu0 0
      %865 = vmatpush1.bf16.msra.mxu0 0
      %866 = vmatprep.subr.bf16.mxu0 0
      %867 = vmatpush1.bf16.msra.mxu0 %v835
      %868 = vmatprep.subr.bf16.mxu0 0
      %869 = vmatpush1.bf16.msra.mxu0 %v834
      %870 = vmatprep.subr.bf16.mxu0 0
      %871 = vmatpush2.bf16.msra.mxu0 0
      %872 = vmatprep.subr.bf16.mxu0 0
      %873 = vmatpush2.bf16.msra.mxu0 0
      %874 = vmatprep.subr.bf16.mxu0 0
      %875 = vmatpush2.bf16.msra.mxu0 0
      %876 = vmatprep.subr.bf16.mxu0 0
      %877 = vmatpush2.bf16.msra.mxu0 0
      %878 = vmatprep.subr.bf16.mxu0 0
      %879 = vmatpush2.bf16.msra.mxu0 0
      %880 = vmatprep.subr.bf16.mxu0 0
      %881 = vmatpush2.bf16.msra.mxu0 0
      %882 = vmatprep.subr.bf16.mxu0 0
      %883 = vmatpush2.bf16.msra.mxu0 0
      %884 = vmatprep.subr.bf16.mxu0 0
      %885 = vmatpush2.bf16.msra.mxu0 0
      %886 = vmatprep.mubr.bf16.mxu0 0
      %887 = vmatmul.mubr.bf16.gmra.mxu0 %v852
      %v888 = vpop.f32.mrf.mxu0
      %v889 = vadd.f32 %v839, %v888
      %v890 = vpop.f32.mrf.mxu0
      %v891 = vpop.f32.mrf.mxu0
      %v892 = vadd.f32 %v844, %v891
      %v893 = vpop.f32.mrf.mxu0
      %894 = vdwg.mxu0
      %v895 = vpack.c.bf16 %v892, %v889
      %v897 = vunpack.c.l.b16 %v895
      %v898 = vunpack.c.h.b16 %v895
      %v899 = vpack.c.b16 %v897, %v897
      %v900 = vpack.c.b16 %v898, %v898
      %903 = vst [vmem:[%s309] sm:$0xf] %v899
      %vm904 = vcmask 1040384
      %vm905 = vsmask.f32 256
      %vm906 = vmand %vm904, %vm905
      %v907 = vld [vmem:[%s309 + $0x4] sm:$0x1]
      %v908 = vsel %vm906, %v900, %v907
      %909 = vst [vmem:[%s309 + $0x4] sm:$0x1] %v908
      %p910 = scmp.lt.s32.totalorder %s22, 1
      %s911 = scalar_select %p910, %s22, 1
      %p912 = scmp.lt.s32.totalorder %s23, 0
      %s913 = scalar_select %p912, %s23, 0
      %s914 = smul.addr %s911, 2
      %s915 = sadd.s32 %s913, %s914
      %s916 = smul.addr %s915, 4
      %s917 = scalar_lea.vmem %s7, %s916
      // Predicated region
      $region49: #{rotation_model_pallas.1} parent=47 // pred_check
        %p918 = pneg %p204
      $region50: #{rotation_model_pallas.1} parent=47 // pred_check_branch
        %920 = sbr.rel (%p918) target = $region52
      $region51: #{rotation_model_pallas.1} parent=47 // pred_region
        _
      $region52: #{rotation_model_pallas.1} parent=47 // pred_fallthru
        _
    $region48: #{rotation_model_pallas.1} parent=5 // pred_fallthru
      _
    %p921 = scmp.le.s32.totalorder 2, %s13
    // Predicated region
    $region53: #{rotation_model_pallas.1} parent=5 // pred_check
      %p922 = pneg %p921
    $region54: #{rotation_model_pallas.1} parent=5 // pred_check_branch
      %924 = sbr.rel (%p922) target = $region56
    $region55: #{rotation_model_pallas.1} parent=5 // pred_region
      %s925 = ssub.s32 %s13, 2
      // Predicated region
      $region57: #{rotation_model_pallas.1} parent=55 // pred_check
        %p926 = pneg %p210
      $region58: #{rotation_model_pallas.1} parent=55 // pred_check_branch
        %928 = sbr.rel (%p926) target = $region60
      $region59: #{rotation_model_pallas.1} parent=55 // pred_region
        %p929 = scmp.lt.s32.totalorder %s24, 1
        %s930 = scalar_select %p929, %s24, 1
        %p931 = scmp.lt.s32.totalorder %s25, 0
        %s932 = scalar_select %p931, %s25, 0
        %s933 = smul.addr %s930, 2
        %s934 = sadd.s32 %s932, %s933
        %s935 = smul.addr %s934, 4
        %s936 = scalar_lea.vmem %s7, %s935
      $region60: #{rotation_model_pallas.1} parent=55 // pred_fallthru
        _
    $region56: #{rotation_model_pallas.1} parent=5 // pred_fallthru
      _
  $region6: #{rotation_model_pallas.1} parent=0 // loop_footer
    %s17 = sadd.s32 1, %s13
  $region7: #{rotation_model_pallas.1} parent=0 // loop_footer_branch
    %12 = sbr.rel target = $region3
  $region8: #{rotation_model_pallas.1} parent=0 // loop_exit
    _

</llo_original>
